<compile_context>
chip_gen: v7x
topology: tpu7x:2x2x1
jax: 0.10.0
libtpu: 0.0.40
codegen_flags: <defaults>
</compile_context>

<pallas_src>
import jax
import jax.numpy as jnp
from jax.experimental import pallas as pl
from jax.experimental.pallas import tpu as pltpu


def _round_up(n, m):
    return ((n + m - 1) // m) * m


def mlp_kernel(x_ref,
               w1_ref, b1_ref,
               w2_ref, b2_ref,
               w3_ref, b3_ref,
               w4_ref, b4_ref,
               w5_ref, b5_ref,
               o_ref):
    """Fused 5-layer MLP forward for one batch tile.
    bf16 operands -> MXU with f32 accumulation; bias + ReLU in f32 on the VPU."""
    h = x_ref[...]                                                       # bf16 [tile, Dp]

    h = jnp.dot(h, w1_ref[...], preferred_element_type=jnp.float32) + b1_ref[...]
    h = jnp.maximum(h, 0.0).astype(jnp.bfloat16)                         # relu(fc1)

    h = jnp.dot(h, w2_ref[...], preferred_element_type=jnp.float32) + b2_ref[...]
    h = jnp.maximum(h, 0.0).astype(jnp.bfloat16)                         # relu(fc2)

    h = jnp.dot(h, w3_ref[...], preferred_element_type=jnp.float32) + b3_ref[...]
    h = jnp.maximum(h, 0.0).astype(jnp.bfloat16)                         # relu(fc3)

    h = jnp.dot(h, w4_ref[...], preferred_element_type=jnp.float32) + b4_ref[...]
    h = jnp.maximum(h, 0.0).astype(jnp.bfloat16)                         # relu(fc4), padded to 128 lanes

    out = jnp.dot(h, w5_ref[...], preferred_element_type=jnp.float32) + b5_ref[...]
    o_ref[...] = out.astype(o_ref.dtype)                                 # lane-dense [tile, 128] store


def house_price_predictor(x, params, *, tile_b=512):
    """x: [B, input_dim] float32. params: list of (w, b) per layer with
    w[l]: [in, out] float32, b[l]: [1, out] float32. Returns [B, 1] float32."""
    B, D = x.shape
    (w1, b1), (w2, b2), (w3, b3), (w4, b4), (w5, b5) = params

    # ---- choose batch tile (multiple of 8, capped; >=2 parallel steps for large B on v7x) ----
    Bp8 = _round_up(B, 8)
    tile = min(Bp8, _round_up(tile_b, 8))
    if B > 256 and pl.cdiv(Bp8, tile) < 2:
        tile = _round_up(pl.cdiv(Bp8, 2), 8)
    Bp = _round_up(B, tile)

    # ---- zero-pad to lane-friendly shapes and cast weights/activations to bf16 ----
    Dp = max(128, _round_up(D, 128))
    xp = jnp.zeros((Bp, Dp), jnp.float32).at[:B, :D].set(x).astype(jnp.bfloat16)
    w1p = jnp.zeros((Dp, 512), jnp.float32).at[:D, :].set(w1).astype(jnp.bfloat16)
    w2b = w2.astype(jnp.bfloat16)
    w3b = w3.astype(jnp.bfloat16)
    # pad the 64-wide fc4/fc5 boundary to 128 and the final output column to 128 (lane dense)
    w4p = jnp.zeros((128, 128), jnp.float32).at[:, :64].set(w4).astype(jnp.bfloat16)
    b4p = jnp.zeros((1, 128), jnp.float32).at[:, :64].set(b4)
    w5p = jnp.zeros((128, 128), jnp.float32).at[:64, :1].set(w5).astype(jnp.bfloat16)
    b5p = jnp.zeros((1, 128), jnp.float32).at[:, :1].set(b5)

    def full_spec(shape):
        # small constant operand: whole array resident for every grid step
        return pl.BlockSpec(shape, lambda i: (0,) * len(shape))

    grid = (Bp // tile,)

    flops = 2 * Bp * (Dp * 512 + 512 * 256 + 256 * 128 + 128 * 128 + 128 * 128)
    bytes_accessed = (
        xp.size * 2
        + (w1p.size + w2b.size + w3b.size + w4p.size + w5p.size) * 2
        + (b1.size + b2.size + b3.size + b4p.size + b5p.size) * 4
        + Bp * 128 * 4
    )

    out = pl.pallas_call(
        mlp_kernel,
        out_shape=jax.ShapeDtypeStruct((Bp, 128), jnp.float32),
        grid_spec=pltpu.PrefetchScalarGridSpec(
            num_scalar_prefetch=0,
            grid=grid,
            in_specs=[
                pl.BlockSpec((tile, Dp), lambda i: (i, 0)),   # x tile
                full_spec(w1p.shape), full_spec(b1.shape),
                full_spec(w2b.shape), full_spec(b2.shape),
                full_spec(w3b.shape), full_spec(b3.shape),
                full_spec(w4p.shape), full_spec(b4p.shape),
                full_spec(w5p.shape), full_spec(b5p.shape),
            ],
            out_specs=pl.BlockSpec((tile, 128), lambda i: (i, 0)),
        ),
        compiler_params=pltpu.CompilerParams(
            dimension_semantics=("parallel",),
            vmem_limit_bytes=32 * 1024 * 1024,
        ),
        cost_estimate=pl.CostEstimate(
            flops=flops, transcendentals=0, bytes_accessed=bytes_accessed),
    )(xp, w1p, b1, w2b, b2, w3b, b3, w4p, b4p, w5p, b5p)

    return out[:B, :1]


def init_params(key, input_dim):
    """Deterministic init mimicking nn.Linear default (uniform +/- 1/sqrt(fan_in))."""
    dims = [input_dim, 512, 256, 128, 64, 1]
    params = []
    for l in range(5):
        key, kw, kb = jax.random.split(key, 3)
        fan_in, fan_out = dims[l], dims[l + 1]
        bound = 1.0 / jnp.sqrt(jnp.float32(fan_in))
        w = jax.random.uniform(kw, (fan_in, fan_out), jnp.float32, -bound, bound)
        b = jax.random.uniform(kb, (1, fan_out), jnp.float32, -bound, bound)
        params.append((w, b))
    return params


def reference_forward(x, params):
    """Pure-JAX reference matching the kernel's numerics:
    bf16 weights/activations, f32 accumulation, f32 bias + ReLU."""
    h = x.astype(jnp.bfloat16)
    for i, (w, b) in enumerate(params):
        h = jnp.dot(h, w.astype(jnp.bfloat16), preferred_element_type=jnp.float32) + b
        if i < 4:
            h = jnp.maximum(h, 0.0).astype(jnp.bfloat16)
    return h


if __name__ == "__main__":
    key = jax.random.PRNGKey(0)
    k_params, k_x, k_x2 = jax.random.split(key, 3)

    input_dim = 32   # stand-in for X_test.shape[1]
    params = init_params(k_params, input_dim)

    # small-batch case (whole-batch tile path)
    batch = 8
    x = jax.random.normal(k_x, (batch, input_dim), jnp.float32)
    out = jax.block_until_ready(house_price_predictor(x, params))
    ref = reference_forward(x, params)
    assert out.shape == (batch, 1), out.shape
    assert jnp.allclose(out, ref, atol=1e-2, rtol=1e-2), (out, ref)

    # ragged larger batch (exercises batch tiling, row padding and the multi-step grid)
    batch2 = 300
    x2 = jax.random.normal(k_x2, (batch2, input_dim), jnp.float32)
    out2 = jax.block_until_ready(house_price_predictor(x2, params, tile_b=128))
    ref2 = reference_forward(x2, params)
    assert out2.shape == (batch2, 1), out2.shape
    assert jnp.allclose(out2, ref2, atol=1e-2, rtol=1e-2)
    assert jnp.all(jnp.isfinite(out2))

    print("KERNEL_OK")
</pallas_src>

<mosaic_0001>
module attributes {stable_mosaic.version = 11 : i64} {
  func.func @mlp_kernel(%arg0: i32, %arg1: memref<8x128xbf16, #tpu.memory_space<vmem>>, %arg2: memref<128x512xbf16, #tpu.memory_space<vmem>>, %arg3: memref<1x512xf32, #tpu.memory_space<vmem>>, %arg4: memref<512x256xbf16, #tpu.memory_space<vmem>>, %arg5: memref<1x256xf32, #tpu.memory_space<vmem>>, %arg6: memref<256x128xbf16, #tpu.memory_space<vmem>>, %arg7: memref<1x128xf32, #tpu.memory_space<vmem>>, %arg8: memref<128x128xbf16, #tpu.memory_space<vmem>>, %arg9: memref<1x128xf32, #tpu.memory_space<vmem>>, %arg10: memref<128x128xbf16, #tpu.memory_space<vmem>>, %arg11: memref<1x128xf32, #tpu.memory_space<vmem>>, %arg12: memref<8x128xf32, #tpu.memory_space<vmem>>) attributes {dimension_semantics = [#tpu.dimension_semantics<parallel>], iteration_bounds = array<i64: 1>, scalar_prefetch = 0 : i64, scratch_operands = 0 : i64, tpu.core_type = #tpu.core_type<tc>, window_params = [{transform_indices = @transform_0, window_bounds = array<i64: 8, 128>}, {pipeline_mode = #tpu.pipeline_mode<synchronous>, transform_indices = @transform_1, window_bounds = array<i64: 128, 512>}, {pipeline_mode = #tpu.pipeline_mode<synchronous>, transform_indices = @transform_2, window_bounds = array<i64: 1, 512>}, {pipeline_mode = #tpu.pipeline_mode<synchronous>, transform_indices = @transform_3, window_bounds = array<i64: 512, 256>}, {pipeline_mode = #tpu.pipeline_mode<synchronous>, transform_indices = @transform_4, window_bounds = array<i64: 1, 256>}, {pipeline_mode = #tpu.pipeline_mode<synchronous>, transform_indices = @transform_5, window_bounds = array<i64: 256, 128>}, {pipeline_mode = #tpu.pipeline_mode<synchronous>, transform_indices = @transform_6, window_bounds = array<i64: 1, 128>}, {pipeline_mode = #tpu.pipeline_mode<synchronous>, transform_indices = @transform_7, window_bounds = array<i64: 128, 128>}, {pipeline_mode = #tpu.pipeline_mode<synchronous>, transform_indices = @transform_8, window_bounds = array<i64: 1, 128>}, {pipeline_mode = #tpu.pipeline_mode<synchronous>, transform_indices = @transform_9, window_bounds = array<i64: 128, 128>}, {pipeline_mode = #tpu.pipeline_mode<synchronous>, transform_indices = @transform_10, window_bounds = array<i64: 1, 128>}, {transform_indices = @transform_11, window_bounds = array<i64: 8, 128>}]} {
    %c0 = arith.constant 0 : index
    %c0_0 = arith.constant 0 : index
    %0 = vector.load %arg1[%c0, %c0_0] : memref<8x128xbf16, #tpu.memory_space<vmem>>, vector<8x128xbf16>
    %c0_1 = arith.constant 0 : index
    %c0_2 = arith.constant 0 : index
    %1 = vector.load %arg2[%c0_1, %c0_2] : memref<128x512xbf16, #tpu.memory_space<vmem>>, vector<128x512xbf16>
    %cst = arith.constant dense<0.000000e+00> : vector<8x512xf32>
    %2 = tpu.matmul %0, %1, %cst {dimension_numbers = #tpu.dot_dimension_numbers<[1], [0], [0], [1], [0, 0, 1, 1], [], []>} : vector<8x128xbf16>, vector<128x512xbf16>, vector<8x512xf32> -> vector<8x512xf32>
    %c0_3 = arith.constant 0 : index
    %c0_4 = arith.constant 0 : index
    %3 = vector.load %arg3[%c0_3, %c0_4] : memref<1x512xf32, #tpu.memory_space<vmem>>, vector<1x512xf32>
    %4 = vector.broadcast %3 : vector<1x512xf32> to vector<8x512xf32>
    %5 = arith.addf %2, %4 : vector<8x512xf32>
    %cst_5 = arith.constant 0.000000e+00 : f32
    %6 = vector.broadcast %cst_5 : f32 to vector<8x512xf32>
    %7 = arith.maximumf %5, %6 : vector<8x512xf32>
    %8 = arith.truncf %7 : vector<8x512xf32> to vector<8x512xbf16>
    %c0_6 = arith.constant 0 : index
    %c0_7 = arith.constant 0 : index
    %9 = vector.load %arg4[%c0_6, %c0_7] : memref<512x256xbf16, #tpu.memory_space<vmem>>, vector<512x256xbf16>
    %cst_8 = arith.constant dense<0.000000e+00> : vector<8x256xf32>
    %10 = tpu.matmul %8, %9, %cst_8 {dimension_numbers = #tpu.dot_dimension_numbers<[1], [0], [0], [1], [0, 0, 1, 1], [], []>} : vector<8x512xbf16>, vector<512x256xbf16>, vector<8x256xf32> -> vector<8x256xf32>
    %c0_9 = arith.constant 0 : index
    %c0_10 = arith.constant 0 : index
    %11 = vector.load %arg5[%c0_9, %c0_10] : memref<1x256xf32, #tpu.memory_space<vmem>>, vector<1x256xf32>
    %12 = vector.broadcast %11 : vector<1x256xf32> to vector<8x256xf32>
    %13 = arith.addf %10, %12 : vector<8x256xf32>
    %cst_11 = arith.constant 0.000000e+00 : f32
    %14 = vector.broadcast %cst_11 : f32 to vector<8x256xf32>
    %15 = arith.maximumf %13, %14 : vector<8x256xf32>
    %16 = arith.truncf %15 : vector<8x256xf32> to vector<8x256xbf16>
    %c0_12 = arith.constant 0 : index
    %c0_13 = arith.constant 0 : index
    %17 = vector.load %arg6[%c0_12, %c0_13] : memref<256x128xbf16, #tpu.memory_space<vmem>>, vector<256x128xbf16>
    %cst_14 = arith.constant dense<0.000000e+00> : vector<8x128xf32>
    %18 = tpu.matmul %16, %17, %cst_14 {dimension_numbers = #tpu.dot_dimension_numbers<[1], [0], [0], [1], [0, 0, 1, 1], [], []>} : vector<8x256xbf16>, vector<256x128xbf16>, vector<8x128xf32> -> vector<8x128xf32>
    %c0_15 = arith.constant 0 : index
    %c0_16 = arith.constant 0 : index
    %19 = vector.load %arg7[%c0_15, %c0_16] : memref<1x128xf32, #tpu.memory_space<vmem>>, vector<1x128xf32>
    %20 = vector.broadcast %19 : vector<1x128xf32> to vector<8x128xf32>
    %21 = arith.addf %18, %20 : vector<8x128xf32>
    %cst_17 = arith.constant 0.000000e+00 : f32
    %22 = vector.broadcast %cst_17 : f32 to vector<8x128xf32>
    %23 = arith.maximumf %21, %22 : vector<8x128xf32>
    %24 = arith.truncf %23 : vector<8x128xf32> to vector<8x128xbf16>
    %c0_18 = arith.constant 0 : index
    %c0_19 = arith.constant 0 : index
    %25 = vector.load %arg8[%c0_18, %c0_19] : memref<128x128xbf16, #tpu.memory_space<vmem>>, vector<128x128xbf16>
    %cst_20 = arith.constant dense<0.000000e+00> : vector<8x128xf32>
    %26 = tpu.matmul %24, %25, %cst_20 {dimension_numbers = #tpu.dot_dimension_numbers<[1], [0], [0], [1], [0, 0, 1, 1], [], []>} : vector<8x128xbf16>, vector<128x128xbf16>, vector<8x128xf32> -> vector<8x128xf32>
    %c0_21 = arith.constant 0 : index
    %c0_22 = arith.constant 0 : index
    %27 = vector.load %arg9[%c0_21, %c0_22] : memref<1x128xf32, #tpu.memory_space<vmem>>, vector<1x128xf32>
    %28 = vector.broadcast %27 : vector<1x128xf32> to vector<8x128xf32>
    %29 = arith.addf %26, %28 : vector<8x128xf32>
    %cst_23 = arith.constant 0.000000e+00 : f32
    %30 = vector.broadcast %cst_23 : f32 to vector<8x128xf32>
    %31 = arith.maximumf %29, %30 : vector<8x128xf32>
    %32 = arith.truncf %31 : vector<8x128xf32> to vector<8x128xbf16>
    %c0_24 = arith.constant 0 : index
    %c0_25 = arith.constant 0 : index
    %33 = vector.load %arg10[%c0_24, %c0_25] : memref<128x128xbf16, #tpu.memory_space<vmem>>, vector<128x128xbf16>
    %cst_26 = arith.constant dense<0.000000e+00> : vector<8x128xf32>
    %34 = tpu.matmul %32, %33, %cst_26 {dimension_numbers = #tpu.dot_dimension_numbers<[1], [0], [0], [1], [0, 0, 1, 1], [], []>} : vector<8x128xbf16>, vector<128x128xbf16>, vector<8x128xf32> -> vector<8x128xf32>
    %c0_27 = arith.constant 0 : index
    %c0_28 = arith.constant 0 : index
    %35 = vector.load %arg11[%c0_27, %c0_28] : memref<1x128xf32, #tpu.memory_space<vmem>>, vector<1x128xf32>
    %36 = vector.broadcast %35 : vector<1x128xf32> to vector<8x128xf32>
    %37 = arith.addf %34, %36 : vector<8x128xf32>
    %c0_29 = arith.constant 0 : index
    %c0_30 = arith.constant 0 : index
    %38 = vector.load %arg12[%c0_29, %c0_30] : memref<8x128xf32, #tpu.memory_space<vmem>>, vector<8x128xf32>
    tpu.vector_store %arg12[%c0_29, %c0_30], %37 {strides = array<i32>} : memref<8x128xf32, #tpu.memory_space<vmem>>, vector<8x128xf32>,
    return
  }
  func.func @transform_0(%arg0: i32) -> (i32, i32) {
    %c0_i32 = arith.constant 0 : i32
    %c0_i32_0 = arith.constant 0 : i32
    return %arg0, %c0_i32 : i32, i32
  }
  func.func @transform_1(%arg0: i32) -> (i32, i32) {
    %c0_i32 = arith.constant 0 : i32
    %c0_i32_0 = arith.constant 0 : i32
    %c0_i32_1 = arith.constant 0 : i32
    return %c0_i32, %c0_i32_0 : i32, i32
  }
  func.func @transform_2(%arg0: i32) -> (i32, i32) {
    %c0_i32 = arith.constant 0 : i32
    %c0_i32_0 = arith.constant 0 : i32
    %c0_i32_1 = arith.constant 0 : i32
    return %c0_i32, %c0_i32_0 : i32, i32
  }
  func.func @transform_3(%arg0: i32) -> (i32, i32) {
    %c0_i32 = arith.constant 0 : i32
    %c0_i32_0 = arith.constant 0 : i32
    %c0_i32_1 = arith.constant 0 : i32
    return %c0_i32, %c0_i32_0 : i32, i32
  }
  func.func @transform_4(%arg0: i32) -> (i32, i32) {
    %c0_i32 = arith.constant 0 : i32
    %c0_i32_0 = arith.constant 0 : i32
    %c0_i32_1 = arith.constant 0 : i32
    return %c0_i32, %c0_i32_0 : i32, i32
  }
  func.func @transform_5(%arg0: i32) -> (i32, i32) {
    %c0_i32 = arith.constant 0 : i32
    %c0_i32_0 = arith.constant 0 : i32
    %c0_i32_1 = arith.constant 0 : i32
    return %c0_i32, %c0_i32_0 : i32, i32
  }
  func.func @transform_6(%arg0: i32) -> (i32, i32) {
    %c0_i32 = arith.constant 0 : i32
    %c0_i32_0 = arith.constant 0 : i32
    %c0_i32_1 = arith.constant 0 : i32
    return %c0_i32, %c0_i32_0 : i32, i32
  }
  func.func @transform_7(%arg0: i32) -> (i32, i32) {
    %c0_i32 = arith.constant 0 : i32
    %c0_i32_0 = arith.constant 0 : i32
    %c0_i32_1 = arith.constant 0 : i32
    return %c0_i32, %c0_i32_0 : i32, i32
  }
  func.func @transform_8(%arg0: i32) -> (i32, i32) {
    %c0_i32 = arith.constant 0 : i32
    %c0_i32_0 = arith.constant 0 : i32
    %c0_i32_1 = arith.constant 0 : i32
    return %c0_i32, %c0_i32_0 : i32, i32
  }
  func.func @transform_9(%arg0: i32) -> (i32, i32) {
    %c0_i32 = arith.constant 0 : i32
    %c0_i32_0 = arith.constant 0 : i32
    %c0_i32_1 = arith.constant 0 : i32
    return %c0_i32, %c0_i32_0 : i32, i32
  }
  func.func @transform_10(%arg0: i32) -> (i32, i32) {
    %c0_i32 = arith.constant 0 : i32
    %c0_i32_0 = arith.constant 0 : i32
    %c0_i32_1 = arith.constant 0 : i32
    return %c0_i32, %c0_i32_0 : i32, i32
  }
  func.func @transform_11(%arg0: i32) -> (i32, i32) {
    %c0_i32 = arith.constant 0 : i32
    %c0_i32_0 = arith.constant 0 : i32
    return %arg0, %c0_i32 : i32, i32
  }
}

</mosaic_0001>

<llo_original>
// kernel: tpu_custom_call.1
$region0: #{tpu_custom_call.1}
  #allocation0 [shape = 'u32[]', space=smem, size = 0x4, offset = 0x4, fixed_abs, tag = 'smem constant byte address 0x4 - core index']
  #allocation1 [shape = 'u32[144,128]{1,0:T(1,128)}', space=vmem, size = 0x12000, scoped, tag = 'internal scratch']
  %s0 = inlined_call_operand.hbm [shape: bf16[8,128], index: 0, kind: input, shape index: {}]
  %s1 = inlined_call_operand.hbm [shape: bf16[128,512], index: 1, kind: input, shape index: {}]
  %s2 = inlined_call_operand.vmem [shape: f32[1,512], index: 2, kind: input, shape index: {}]
  %s3 = inlined_call_operand.hbm [shape: bf16[512,256], index: 3, kind: input, shape index: {}]
  %s4 = inlined_call_operand.vmem [shape: f32[1,256], index: 4, kind: input, shape index: {}]
  %s5 = inlined_call_operand.hbm [shape: bf16[256,128], index: 5, kind: input, shape index: {}]
  %s6 = inlined_call_operand.vmem [shape: f32[1,128], index: 6, kind: input, shape index: {}]
  %s7 = inlined_call_operand.hbm [shape: bf16[128,128], index: 7, kind: input, shape index: {}]
  %s8 = inlined_call_operand.vmem [shape: f32[1,128], index: 8, kind: input, shape index: {}]
  %s9 = inlined_call_operand.hbm [shape: bf16[128,128], index: 9, kind: input, shape index: {}]
  %s10 = inlined_call_operand.vmem [shape: f32[1,128], index: 10, kind: input, shape index: {}]
  %s11 = inlined_call_operand.hbm [shape: f32[8,128], index: 11, kind: output, shape index: {}]
  %s12 = sld [smem:[#allocation0]]
  $region78: #{tpu_custom_call.1} parent=0
    _
  %s14 = ssub.s32 1, %s12
  %s15 = scalar_select 0, %s14, %s12
  $region1: #{tpu_custom_call.1} parent=0
    #allocation2 [shape = 'u8[2048]{0}', space=vmem, size = 0x800, scoped, tag = 'input window, operand 0, single buffered']
    #allocation3 [shape = 's32[1]{0}', space=sflag, size = 0x4, scoped, tag = 'scoped memory for tpu_custom_call.1']
    #allocation4 [shape = 's32[1]{0}', space=sflag, size = 0x4, scoped, tag = 'scoped memory for tpu_custom_call.1']
    #allocation5 [shape = 'u8[131072]{0}', space=vmem, size = 0x20000, scoped, tag = 'input window, operand 1, single buffered']
    #allocation6 [shape = 's32[1]{0}', space=sflag, size = 0x4, scoped, tag = 'scoped memory for tpu_custom_call.1']
    #allocation7 [shape = 'u8[262144]{0}', space=vmem, size = 0x40000, scoped, tag = 'input window, operand 3, single buffered']
    #allocation8 [shape = 'u8[65536]{0}', space=vmem, size = 0x10000, scoped, tag = 'input window, operand 5, single buffered']
    #allocation9 [shape = 's32[1]{0}', space=sflag, size = 0x4, scoped, tag = 'scoped memory for tpu_custom_call.1']
    #allocation10 [shape = 'u8[32768]{0}', space=vmem, size = 0x8000, scoped, tag = 'input window, operand 7, single buffered']
    #allocation11 [shape = 'u8[32768]{0}', space=vmem, size = 0x8000, scoped, tag = 'input window, operand 9, single buffered']
    #allocation12 [shape = 's32[1]{0}', space=sflag, size = 0x4, scoped, tag = 'scoped memory for tpu_custom_call.1']
    #allocation13 [shape = 'u8[4096]{0}', space=vmem, size = 0x1000, scoped, tag = 'output window, operand 0, single buffered']
    %16 = vsyncpa [#allocation3], 0
    %17 = vsyncpa [#allocation6], 0
    %18 = vsyncpa [#allocation9], 0
    %19 = vsyncpa [#allocation12], 0
    %20 = vsyncpa [#allocation4], 0
    // Predicated region
    $region2: #{tpu_custom_call.1} parent=1 // pred_check
      _
    $region3: #{tpu_custom_call.1} parent=1 // pred_check_branch
      %22 = sbr.rel (0) target = $region5
    $region4: #{tpu_custom_call.1} parent=1 // pred_region
      %s24 = ssub.s32 64, 64
      %25 = vsyncadd [#allocation3], %s24
      %s27 = sshll.u32 [#allocation2], 4
      %s28 = int_to_ptr.vmem [resolvable:$true] %s27
      %30 = dma.hbm_to_vmem [thread:$0]  %s0, 64, %s28, [#allocation3]
    $region5: #{tpu_custom_call.1} parent=1 // pred_fallthru
      _
    // Predicated region
    $region6: #{tpu_custom_call.1} parent=1 // pred_check
      _
    $region7: #{tpu_custom_call.1} parent=1 // pred_check_branch
      %32 = sbr.rel (0) target = $region9
    $region8: #{tpu_custom_call.1} parent=1 // pred_region
      %s34 = ssub.s32 4096, 4096
      %35 = vsyncadd [#allocation6], %s34
      %s36 = sshll.u32 [#allocation5], 4
      %s37 = int_to_ptr.vmem [resolvable:$true] %s36
      %42 = dma.hbm_to_vmem [thread:$0]  %s1, 4096, %s37, [#allocation6], 256, 256, 16
    $region9: #{tpu_custom_call.1} parent=1 // pred_fallthru
      _
    // Predicated region
    $region10: #{tpu_custom_call.1} parent=1 // pred_check
      _
    $region11: #{tpu_custom_call.1} parent=1 // pred_check_branch
      %44 = sbr.rel (0) target = $region13
    $region12: #{tpu_custom_call.1} parent=1 // pred_region
      _
    $region13: #{tpu_custom_call.1} parent=1 // pred_fallthru
      _
    // Predicated region
    $region14: #{tpu_custom_call.1} parent=1 // pred_check
      _
    $region15: #{tpu_custom_call.1} parent=1 // pred_check_branch
      %46 = sbr.rel (0) target = $region17
    $region16: #{tpu_custom_call.1} parent=1 // pred_region
      %s48 = ssub.s32 8192, 8192
      %49 = vsyncadd [#allocation6], %s48
      %s50 = sshll.u32 [#allocation7], 4
      %s51 = int_to_ptr.vmem [resolvable:$true] %s50
      %56 = dma.hbm_to_vmem [thread:$0]  %s3, 8192, %s51, [#allocation6], 128, 128, 8
    $region17: #{tpu_custom_call.1} parent=1 // pred_fallthru
      _
    // Predicated region
    $region18: #{tpu_custom_call.1} parent=1 // pred_check
      _
    $region19: #{tpu_custom_call.1} parent=1 // pred_check_branch
      %58 = sbr.rel (0) target = $region21
    $region20: #{tpu_custom_call.1} parent=1 // pred_region
      _
    $region21: #{tpu_custom_call.1} parent=1 // pred_fallthru
      _
    // Predicated region
    $region22: #{tpu_custom_call.1} parent=1 // pred_check
      _
    $region23: #{tpu_custom_call.1} parent=1 // pred_check_branch
      %60 = sbr.rel (0) target = $region25
    $region24: #{tpu_custom_call.1} parent=1 // pred_region
      %s62 = ssub.s32 2048, 2048
      %63 = vsyncadd [#allocation9], %s62
      %s64 = sshll.u32 [#allocation8], 4
      %s65 = int_to_ptr.vmem [resolvable:$true] %s64
      %70 = dma.hbm_to_vmem [thread:$0]  %s5, 2048, %s65, [#allocation9], 64, 64, 4
    $region25: #{tpu_custom_call.1} parent=1 // pred_fallthru
      _
    // Predicated region
    $region26: #{tpu_custom_call.1} parent=1 // pred_check
      _
    $region27: #{tpu_custom_call.1} parent=1 // pred_check_branch
      %72 = sbr.rel (0) target = $region29
    $region28: #{tpu_custom_call.1} parent=1 // pred_region
      _
    $region29: #{tpu_custom_call.1} parent=1 // pred_fallthru
      _
    // Predicated region
    $region30: #{tpu_custom_call.1} parent=1 // pred_check
      _
    $region31: #{tpu_custom_call.1} parent=1 // pred_check_branch
      %74 = sbr.rel (0) target = $region33
    $region32: #{tpu_custom_call.1} parent=1 // pred_region
      %s76 = ssub.s32 1024, 1024
      %77 = vsyncadd [#allocation9], %s76
      %s78 = sshll.u32 [#allocation10], 4
      %s79 = int_to_ptr.vmem [resolvable:$true] %s78
      %84 = dma.hbm_to_vmem [thread:$0]  %s7, 1024, %s79, [#allocation9], 64, 64, 4
    $region33: #{tpu_custom_call.1} parent=1 // pred_fallthru
      _
    // Predicated region
    $region34: #{tpu_custom_call.1} parent=1 // pred_check
      _
    $region35: #{tpu_custom_call.1} parent=1 // pred_check_branch
      %86 = sbr.rel (0) target = $region37
    $region36: #{tpu_custom_call.1} parent=1 // pred_region
      _
    $region37: #{tpu_custom_call.1} parent=1 // pred_fallthru
      _
    // Predicated region
    $region38: #{tpu_custom_call.1} parent=1 // pred_check
      _
    $region39: #{tpu_custom_call.1} parent=1 // pred_check_branch
      %88 = sbr.rel (0) target = $region41
    $region40: #{tpu_custom_call.1} parent=1 // pred_region
      %s90 = ssub.s32 1024, 1024
      %91 = vsyncadd [#allocation12], %s90
      %s92 = sshll.u32 [#allocation11], 4
      %s93 = int_to_ptr.vmem [resolvable:$true] %s92
      %98 = dma.hbm_to_vmem [thread:$0]  %s9, 1024, %s93, [#allocation12], 64, 64, 4
    $region41: #{tpu_custom_call.1} parent=1 // pred_fallthru
      _
    // Predicated region
    $region42: #{tpu_custom_call.1} parent=1 // pred_check
      _
    $region43: #{tpu_custom_call.1} parent=1 // pred_check_branch
      %100 = sbr.rel (0) target = $region45
    $region44: #{tpu_custom_call.1} parent=1 // pred_region
      _
    $region45: #{tpu_custom_call.1} parent=1 // pred_fallthru
      _
    // Predicated region
    $region46: #{tpu_custom_call.1} parent=1 // pred_check
      _
    $region47: #{tpu_custom_call.1} parent=1 // pred_check_branch
      %102 = sbr.rel (0) target = $region49
    $region48: #{tpu_custom_call.1} parent=1 // pred_region
      %103 = dma.done [#allocation3], 64
    $region49: #{tpu_custom_call.1} parent=1 // pred_fallthru
      _
    // Predicated region
    $region50: #{tpu_custom_call.1} parent=1 // pred_check
      _
    $region51: #{tpu_custom_call.1} parent=1 // pred_check_branch
      %105 = sbr.rel (0) target = $region53
    $region52: #{tpu_custom_call.1} parent=1 // pred_region
      %106 = dma.done [#allocation6], 4096
    $region53: #{tpu_custom_call.1} parent=1 // pred_fallthru
      _
    // Predicated region
    $region54: #{tpu_custom_call.1} parent=1 // pred_check
      _
    $region55: #{tpu_custom_call.1} parent=1 // pred_check_branch
      %108 = sbr.rel (0) target = $region57
    $region56: #{tpu_custom_call.1} parent=1 // pred_region
      %109 = dma.done [#allocation6], 8192
    $region57: #{tpu_custom_call.1} parent=1 // pred_fallthru
      _
    // Predicated region
    $region58: #{tpu_custom_call.1} parent=1 // pred_check
      _
    $region59: #{tpu_custom_call.1} parent=1 // pred_check_branch
      %111 = sbr.rel (0) target = $region61
    $region60: #{tpu_custom_call.1} parent=1 // pred_region
      %112 = dma.done [#allocation9], 2048
    $region61: #{tpu_custom_call.1} parent=1 // pred_fallthru
      _
    // Predicated region
    $region62: #{tpu_custom_call.1} parent=1 // pred_check
      _
    $region63: #{tpu_custom_call.1} parent=1 // pred_check_branch
      %114 = sbr.rel (0) target = $region65
    $region64: #{tpu_custom_call.1} parent=1 // pred_region
      %115 = dma.done [#allocation9], 1024
    $region65: #{tpu_custom_call.1} parent=1 // pred_fallthru
      _
    // Predicated region
    $region66: #{tpu_custom_call.1} parent=1 // pred_check
      _
    $region67: #{tpu_custom_call.1} parent=1 // pred_check_branch
      %117 = sbr.rel (0) target = $region69
    $region68: #{tpu_custom_call.1} parent=1 // pred_region
      %118 = dma.done [#allocation12], 1024
    $region69: #{tpu_custom_call.1} parent=1 // pred_fallthru
      _
    %v120 = vld [vmem:[#allocation2] sm:$0xf]
    %v121 = vld [vmem:[#allocation5] sm:$0xff]
    %v122 = vld [vmem:[#allocation5 + $0x8] sm:$0xff]
    %v123 = vld [vmem:[#allocation5 + $0x10] sm:$0xff]
    %v124 = vld [vmem:[#allocation5 + $0x18] sm:$0xff]
    %v125 = vld [vmem:[#allocation5 + $0x20] sm:$0xff]
    %v126 = vld [vmem:[#allocation5 + $0x28] sm:$0xff]
    %v127 = vld [vmem:[#allocation5 + $0x30] sm:$0xff]
    %v128 = vld [vmem:[#allocation5 + $0x38] sm:$0xff]
    %v129 = vld [vmem:[#allocation5 + $0x40] sm:$0xff]
    %v130 = vld [vmem:[#allocation5 + $0x48] sm:$0xff]
    %v131 = vld [vmem:[#allocation5 + $0x50] sm:$0xff]
    %v132 = vld [vmem:[#allocation5 + $0x58] sm:$0xff]
    %v133 = vld [vmem:[#allocation5 + $0x60] sm:$0xff]
    %v134 = vld [vmem:[#allocation5 + $0x68] sm:$0xff]
    %v135 = vld [vmem:[#allocation5 + $0x70] sm:$0xff]
    %v136 = vld [vmem:[#allocation5 + $0x78] sm:$0xff]
    %v137 = vld [vmem:[#allocation5 + $0x80] sm:$0xff]
    %v138 = vld [vmem:[#allocation5 + $0x88] sm:$0xff]
    %v139 = vld [vmem:[#allocation5 + $0x90] sm:$0xff]
    %v140 = vld [vmem:[#allocation5 + $0x98] sm:$0xff]
    %v141 = vld [vmem:[#allocation5 + $0xa0] sm:$0xff]
    %v142 = vld [vmem:[#allocation5 + $0xa8] sm:$0xff]
    %v143 = vld [vmem:[#allocation5 + $0xb0] sm:$0xff]
    %v144 = vld [vmem:[#allocation5 + $0xb8] sm:$0xff]
    %v145 = vld [vmem:[#allocation5 + $0xc0] sm:$0xff]
    %v146 = vld [vmem:[#allocation5 + $0xc8] sm:$0xff]
    %v147 = vld [vmem:[#allocation5 + $0xd0] sm:$0xff]
    %v148 = vld [vmem:[#allocation5 + $0xd8] sm:$0xff]
    %v149 = vld [vmem:[#allocation5 + $0xe0] sm:$0xff]
    %v150 = vld [vmem:[#allocation5 + $0xe8] sm:$0xff]
    %v151 = vld [vmem:[#allocation5 + $0xf0] sm:$0xff]
    %v152 = vld [vmem:[#allocation5 + $0xf8] sm:$0xff]
    %v153 = vld [vmem:[%s2] sm:$0xf]
    %v155 = vlaneseq
    %v156 = vshrl.u32 %v155, 7
    %v157 = vsub.s32 0, %v156
    %v158 = vrot.slane %v153, %v157
    %v159 = vlaneseq
    %v160 = vshrl.u32 %v159, 7
    %v161 = vsub.s32 1, %v160
    %v162 = vrot.slane %v153, %v161
    %v163 = vlaneseq
    %v164 = vshrl.u32 %v163, 7
    %v165 = vsub.s32 2, %v164
    %v166 = vrot.slane %v153, %v165
    %v167 = vlaneseq
    %v168 = vshrl.u32 %v167, 7
    %v169 = vsub.s32 3, %v168
    %v170 = vrot.slane %v153, %v169
    %v207 = vunpack.c.l.b16 %v121
    %v208 = vunpack.c.h.b16 %v121
    %v209 = vunpack.c.l.b16 %v122
    %v210 = vunpack.c.h.b16 %v122
    %v211 = vunpack.c.l.b16 %v123
    %v212 = vunpack.c.h.b16 %v123
    %v213 = vunpack.c.l.b16 %v124
    %v214 = vunpack.c.h.b16 %v124
    %v215 = vunpack.c.l.b16 %v125
    %v216 = vunpack.c.h.b16 %v125
    %v217 = vunpack.c.l.b16 %v126
    %v218 = vunpack.c.h.b16 %v126
    %v219 = vunpack.c.l.b16 %v127
    %v220 = vunpack.c.h.b16 %v127
    %v221 = vunpack.c.l.b16 %v128
    %v222 = vunpack.c.h.b16 %v128
    %v223 = vunpack.c.l.b16 %v129
    %v224 = vunpack.c.h.b16 %v129
    %v225 = vunpack.c.l.b16 %v130
    %v226 = vunpack.c.h.b16 %v130
    %v227 = vunpack.c.l.b16 %v131
    %v228 = vunpack.c.h.b16 %v131
    %v229 = vunpack.c.l.b16 %v132
    %v230 = vunpack.c.h.b16 %v132
    %v231 = vunpack.c.l.b16 %v133
    %v232 = vunpack.c.h.b16 %v133
    %v233 = vunpack.c.l.b16 %v134
    %v234 = vunpack.c.h.b16 %v134
    %v235 = vunpack.c.l.b16 %v135
    %v236 = vunpack.c.h.b16 %v135
    %v237 = vunpack.c.l.b16 %v136
    %v238 = vunpack.c.h.b16 %v136
    %v239 = vunpack.c.l.b16 %v137
    %v240 = vunpack.c.h.b16 %v137
    %v241 = vunpack.c.l.b16 %v138
    %v242 = vunpack.c.h.b16 %v138
    %v243 = vunpack.c.l.b16 %v139
    %v244 = vunpack.c.h.b16 %v139
    %v245 = vunpack.c.l.b16 %v140
    %v246 = vunpack.c.h.b16 %v140
    %v247 = vunpack.c.l.b16 %v141
    %v248 = vunpack.c.h.b16 %v141
    %v249 = vunpack.c.l.b16 %v142
    %v250 = vunpack.c.h.b16 %v142
    %v251 = vunpack.c.l.b16 %v143
    %v252 = vunpack.c.h.b16 %v143
    %v253 = vunpack.c.l.b16 %v144
    %v254 = vunpack.c.h.b16 %v144
    %v255 = vunpack.c.l.b16 %v145
    %v256 = vunpack.c.h.b16 %v145
    %v257 = vunpack.c.l.b16 %v146
    %v258 = vunpack.c.h.b16 %v146
    %v259 = vunpack.c.l.b16 %v147
    %v260 = vunpack.c.h.b16 %v147
    %v261 = vunpack.c.l.b16 %v148
    %v262 = vunpack.c.h.b16 %v148
    %v263 = vunpack.c.l.b16 %v149
    %v264 = vunpack.c.h.b16 %v149
    %v265 = vunpack.c.l.b16 %v150
    %v266 = vunpack.c.h.b16 %v150
    %v267 = vunpack.c.l.b16 %v151
    %v268 = vunpack.c.h.b16 %v151
    %v269 = vunpack.c.l.b16 %v152
    %v270 = vunpack.c.h.b16 %v152
    %v271 = vpack.c.b16 %v211, %v207
    %v272 = vpack.c.b16 %v212, %v208
    %v273 = vpack.c.b16 %v213, %v209
    %v274 = vpack.c.b16 %v214, %v210
    %v275 = vpack.c.b16 %v219, %v215
    %v276 = vpack.c.b16 %v220, %v216
    %v277 = vpack.c.b16 %v221, %v217
    %v278 = vpack.c.b16 %v222, %v218
    %v279 = vpack.c.b16 %v227, %v223
    %v280 = vpack.c.b16 %v228, %v224
    %v281 = vpack.c.b16 %v229, %v225
    %v282 = vpack.c.b16 %v230, %v226
    %v283 = vpack.c.b16 %v235, %v231
    %v284 = vpack.c.b16 %v236, %v232
    %v285 = vpack.c.b16 %v237, %v233
    %v286 = vpack.c.b16 %v238, %v234
    %v287 = vpack.c.b16 %v243, %v239
    %v288 = vpack.c.b16 %v244, %v240
    %v289 = vpack.c.b16 %v245, %v241
    %v290 = vpack.c.b16 %v246, %v242
    %v291 = vpack.c.b16 %v251, %v247
    %v292 = vpack.c.b16 %v252, %v248
    %v293 = vpack.c.b16 %v253, %v249
    %v294 = vpack.c.b16 %v254, %v250
    %v295 = vpack.c.b16 %v259, %v255
    %v296 = vpack.c.b16 %v260, %v256
    %v297 = vpack.c.b16 %v261, %v257
    %v298 = vpack.c.b16 %v262, %v258
    %v299 = vpack.c.b16 %v267, %v263
    %v300 = vpack.c.b16 %v268, %v264
    %v301 = vpack.c.b16 %v269, %v265
    %v302 = vpack.c.b16 %v270, %v266
    %335 = vmatprep.subr.bf16.mxu0 %v272
    %336 = vmatpush1.bf16.msra.mxu0 %v271
    %337 = vmatprep.subr.bf16.mxu0 %v276
    %338 = vmatpush1.bf16.msra.mxu0 %v275
    %339 = vmatprep.subr.bf16.mxu0 %v280
    %340 = vmatpush1.bf16.msra.mxu0 %v279
    %341 = vmatprep.subr.bf16.mxu0 %v284
    %342 = vmatpush1.bf16.msra.mxu0 %v283
    %343 = vmatprep.subr.bf16.mxu0 %v288
    %344 = vmatpush1.bf16.msra.mxu0 %v287
    %345 = vmatprep.subr.bf16.mxu0 %v292
    %346 = vmatpush1.bf16.msra.mxu0 %v291
    %347 = vmatprep.subr.bf16.mxu0 %v296
    %348 = vmatpush1.bf16.msra.mxu0 %v295
    %349 = vmatprep.subr.bf16.mxu0 %v300
    %350 = vmatpush1.bf16.msra.mxu0 %v299
    %351 = vmatprep.subr.bf16.mxu0 0
    %352 = vmatpush1.bf16.msra.mxu0 0
    %353 = vmatprep.subr.bf16.mxu0 0
    %354 = vmatpush1.bf16.msra.mxu0 0
    %355 = vmatprep.subr.bf16.mxu0 0
    %356 = vmatpush1.bf16.msra.mxu0 0
    %357 = vmatprep.subr.bf16.mxu0 0
    %358 = vmatpush1.bf16.msra.mxu0 0
    %359 = vmatprep.subr.bf16.mxu0 0
    %360 = vmatpush1.bf16.msra.mxu0 0
    %361 = vmatprep.subr.bf16.mxu0 0
    %362 = vmatpush1.bf16.msra.mxu0 0
    %363 = vmatprep.subr.bf16.mxu0 0
    %364 = vmatpush1.bf16.msra.mxu0 0
    %365 = vmatprep.subr.bf16.mxu0 0
    %366 = vmatpush1.bf16.msra.mxu0 0
    %367 = vmatprep.mubr.bf16.mxu0 0
    %368 = vmatmul.mubr.bf16.gmra.mrb[0].mxu0 %v120
    %v369 = vpop.f32.mrb[0].mxu0
    %v370 = vadd.f32 %v158, %v369
    %v371 = vpop.f32.mrb[0].mxu0
    %v372 = vadd.f32 %v162, %v371
    %v373 = vpop.f32.mrb[0].mxu0
    %v374 = vpop.f32.mrb[0].mxu0
    %375 = vdwg.mxu0
    %376 = vmatprep.subr.bf16.mxu0 %v274
    %377 = vmatpush1.bf16.msra.mxu0 %v273
    %378 = vmatprep.subr.bf16.mxu0 %v278
    %379 = vmatpush1.bf16.msra.mxu0 %v277
    %380 = vmatprep.subr.bf16.mxu0 %v282
    %381 = vmatpush1.bf16.msra.mxu0 %v281
    %382 = vmatprep.subr.bf16.mxu0 %v286
    %383 = vmatpush1.bf16.msra.mxu0 %v285
    %384 = vmatprep.subr.bf16.mxu0 %v290
    %385 = vmatpush1.bf16.msra.mxu0 %v289
    %386 = vmatprep.subr.bf16.mxu0 %v294
    %387 = vmatpush1.bf16.msra.mxu0 %v293
    %388 = vmatprep.subr.bf16.mxu0 %v298
    %389 = vmatpush1.bf16.msra.mxu0 %v297
    %390 = vmatprep.subr.bf16.mxu0 %v302
    %391 = vmatpush1.bf16.msra.mxu0 %v301
    %392 = vmatprep.subr.bf16.mxu0 0
    %393 = vmatpush1.bf16.msra.mxu0 0
    %394 = vmatprep.subr.bf16.mxu0 0
    %395 = vmatpush1.bf16.msra.mxu0 0
    %396 = vmatprep.subr.bf16.mxu0 0
    %397 = vmatpush1.bf16.msra.mxu0 0
    %398 = vmatprep.subr.bf16.mxu0 0
    %399 = vmatpush1.bf16.msra.mxu0 0
    %400 = vmatprep.subr.bf16.mxu0 0
    %401 = vmatpush1.bf16.msra.mxu0 0
    %402 = vmatprep.subr.bf16.mxu0 0
    %403 = vmatpush1.bf16.msra.mxu0 0
    %404 = vmatprep.subr.bf16.mxu0 0
    %405 = vmatpush1.bf16.msra.mxu0 0
    %406 = vmatprep.subr.bf16.mxu0 0
    %407 = vmatpush1.bf16.msra.mxu0 0
    %408 = vmatprep.mubr.bf16.mxu0 0
    %409 = vmatmul.mubr.bf16.gmra.mrb[0].mxu0 %v120
    %v410 = vpop.f32.mrb[0].mxu0
    %v411 = vadd.f32 %v166, %v410
    %v412 = vpop.f32.mrb[0].mxu0
    %v413 = vadd.f32 %v170, %v412
    %v414 = vpop.f32.mrb[0].mxu0
    %v415 = vpop.f32.mrb[0].mxu0
    %416 = vdwg.mxu0
    %v417 = vmax.f32 %v370, 0.0
    %v418 = vmax.f32 %v372, 0.0
    %v419 = vmax.f32 %v411, 0.0
    %v420 = vmax.f32 %v413, 0.0
    %v421 = vpack.c.bf16 %v417, %v417
    %v422 = vpack.c.bf16 %v418, %v418
    %v423 = vpack.c.bf16 %v419, %v419
    %v424 = vpack.c.bf16 %v420, %v420
    %v425 = vld [vmem:[#allocation7] sm:$0xff]
    %v426 = vld [vmem:[#allocation7 + $0x8] sm:$0xff]
    %v427 = vld [vmem:[#allocation7 + $0x10] sm:$0xff]
    %v428 = vld [vmem:[#allocation7 + $0x18] sm:$0xff]
    %v429 = vld [vmem:[#allocation7 + $0x20] sm:$0xff]
    %v430 = vld [vmem:[#allocation7 + $0x28] sm:$0xff]
    %v431 = vld [vmem:[#allocation7 + $0x30] sm:$0xff]
    %v432 = vld [vmem:[#allocation7 + $0x38] sm:$0xff]
    %v433 = vld [vmem:[#allocation7 + $0x40] sm:$0xff]
    %v434 = vld [vmem:[#allocation7 + $0x48] sm:$0xff]
    %v435 = vld [vmem:[#allocation7 + $0x50] sm:$0xff]
    %v436 = vld [vmem:[#allocation7 + $0x58] sm:$0xff]
    %v437 = vld [vmem:[#allocation7 + $0x60] sm:$0xff]
    %v438 = vld [vmem:[#allocation7 + $0x68] sm:$0xff]
    %v439 = vld [vmem:[#allocation7 + $0x70] sm:$0xff]
    %v440 = vld [vmem:[#allocation7 + $0x78] sm:$0xff]
    %v441 = vld [vmem:[#allocation7 + $0x80] sm:$0xff]
    %v442 = vld [vmem:[#allocation7 + $0x88] sm:$0xff]
    %v443 = vld [vmem:[#allocation7 + $0x90] sm:$0xff]
    %v444 = vld [vmem:[#allocation7 + $0x98] sm:$0xff]
    %v445 = vld [vmem:[#allocation7 + $0xa0] sm:$0xff]
    %v446 = vld [vmem:[#allocation7 + $0xa8] sm:$0xff]
    %v447 = vld [vmem:[#allocation7 + $0xb0] sm:$0xff]
    %v448 = vld [vmem:[#allocation7 + $0xb8] sm:$0xff]
    %v449 = vld [vmem:[#allocation7 + $0xc0] sm:$0xff]
    %v450 = vld [vmem:[#allocation7 + $0xc8] sm:$0xff]
    %v451 = vld [vmem:[#allocation7 + $0xd0] sm:$0xff]
    %v452 = vld [vmem:[#allocation7 + $0xd8] sm:$0xff]
    %v453 = vld [vmem:[#allocation7 + $0xe0] sm:$0xff]
    %v454 = vld [vmem:[#allocation7 + $0xe8] sm:$0xff]
    %v455 = vld [vmem:[#allocation7 + $0xf0] sm:$0xff]
    %v456 = vld [vmem:[#allocation7 + $0xf8] sm:$0xff]
    %v457 = vld [vmem:[#allocation7 + $0x100] sm:$0xff]
    %v458 = vld [vmem:[#allocation7 + $0x108] sm:$0xff]
    %v459 = vld [vmem:[#allocation7 + $0x110] sm:$0xff]
    %v460 = vld [vmem:[#allocation7 + $0x118] sm:$0xff]
    %v461 = vld [vmem:[#allocation7 + $0x120] sm:$0xff]
    %v462 = vld [vmem:[#allocation7 + $0x128] sm:$0xff]
    %v463 = vld [vmem:[#allocation7 + $0x130] sm:$0xff]
    %v464 = vld [vmem:[#allocation7 + $0x138] sm:$0xff]
    %v465 = vld [vmem:[#allocation7 + $0x140] sm:$0xff]
    %v466 = vld [vmem:[#allocation7 + $0x148] sm:$0xff]
    %v467 = vld [vmem:[#allocation7 + $0x150] sm:$0xff]
    %v468 = vld [vmem:[#allocation7 + $0x158] sm:$0xff]
    %v469 = vld [vmem:[#allocation7 + $0x160] sm:$0xff]
    %v470 = vld [vmem:[#allocation7 + $0x168] sm:$0xff]
    %v471 = vld [vmem:[#allocation7 + $0x170] sm:$0xff]
    %v472 = vld [vmem:[#allocation7 + $0x178] sm:$0xff]
    %v473 = vld [vmem:[#allocation7 + $0x180] sm:$0xff]
    %v474 = vld [vmem:[#allocation7 + $0x188] sm:$0xff]
    %v475 = vld [vmem:[#allocation7 + $0x190] sm:$0xff]
    %v476 = vld [vmem:[#allocation7 + $0x198] sm:$0xff]
    %v477 = vld [vmem:[#allocation7 + $0x1a0] sm:$0xff]
    %v478 = vld [vmem:[#allocation7 + $0x1a8] sm:$0xff]
    %v479 = vld [vmem:[#allocation7 + $0x1b0] sm:$0xff]
    %v480 = vld [vmem:[#allocation7 + $0x1b8] sm:$0xff]
    %v481 = vld [vmem:[#allocation7 + $0x1c0] sm:$0xff]
    %v482 = vld [vmem:[#allocation7 + $0x1c8] sm:$0xff]
    %v483 = vld [vmem:[#allocation7 + $0x1d0] sm:$0xff]
    %v484 = vld [vmem:[#allocation7 + $0x1d8] sm:$0xff]
    %v485 = vld [vmem:[#allocation7 + $0x1e0] sm:$0xff]
    %v486 = vld [vmem:[#allocation7 + $0x1e8] sm:$0xff]
    %v487 = vld [vmem:[#allocation7 + $0x1f0] sm:$0xff]
    %v488 = vld [vmem:[#allocation7 + $0x1f8] sm:$0xff]
    %v489 = vld [vmem:[%s4] sm:$0x3]
    %v491 = vlaneseq
    %v492 = vshrl.u32 %v491, 7
    %v493 = vsub.s32 0, %v492
    %v494 = vrot.slane %v489, %v493
    %v495 = vlaneseq
    %v496 = vshrl.u32 %v495, 7
    %v497 = vsub.s32 1, %v496
    %v498 = vrot.slane %v489, %v497
    %v565 = vunpack.c.l.b16 %v425
    %v566 = vunpack.c.h.b16 %v425
    %v567 = vunpack.c.l.b16 %v426
    %v568 = vunpack.c.h.b16 %v426
    %v569 = vunpack.c.l.b16 %v427
    %v570 = vunpack.c.h.b16 %v427
    %v571 = vunpack.c.l.b16 %v428
    %v572 = vunpack.c.h.b16 %v428
    %v573 = vunpack.c.l.b16 %v429
    %v574 = vunpack.c.h.b16 %v429
    %v575 = vunpack.c.l.b16 %v430
    %v576 = vunpack.c.h.b16 %v430
    %v577 = vunpack.c.l.b16 %v431
    %v578 = vunpack.c.h.b16 %v431
    %v579 = vunpack.c.l.b16 %v432
    %v580 = vunpack.c.h.b16 %v432
    %v581 = vunpack.c.l.b16 %v433
    %v582 = vunpack.c.h.b16 %v433
    %v583 = vunpack.c.l.b16 %v434
    %v584 = vunpack.c.h.b16 %v434
    %v585 = vunpack.c.l.b16 %v435
    %v586 = vunpack.c.h.b16 %v435
    %v587 = vunpack.c.l.b16 %v436
    %v588 = vunpack.c.h.b16 %v436
    %v589 = vunpack.c.l.b16 %v437
    %v590 = vunpack.c.h.b16 %v437
    %v591 = vunpack.c.l.b16 %v438
    %v592 = vunpack.c.h.b16 %v438
    %v593 = vunpack.c.l.b16 %v439
    %v594 = vunpack.c.h.b16 %v439
    %v595 = vunpack.c.l.b16 %v440
    %v596 = vunpack.c.h.b16 %v440
    %v597 = vunpack.c.l.b16 %v441
    %v598 = vunpack.c.h.b16 %v441
    %v599 = vunpack.c.l.b16 %v442
    %v600 = vunpack.c.h.b16 %v442
    %v601 = vunpack.c.l.b16 %v443
    %v602 = vunpack.c.h.b16 %v443
    %v603 = vunpack.c.l.b16 %v444
    %v604 = vunpack.c.h.b16 %v444
    %v605 = vunpack.c.l.b16 %v445
    %v606 = vunpack.c.h.b16 %v445
    %v607 = vunpack.c.l.b16 %v446
    %v608 = vunpack.c.h.b16 %v446
    %v609 = vunpack.c.l.b16 %v447
    %v610 = vunpack.c.h.b16 %v447
    %v611 = vunpack.c.l.b16 %v448
    %v612 = vunpack.c.h.b16 %v448
    %v613 = vunpack.c.l.b16 %v449
    %v614 = vunpack.c.h.b16 %v449
    %v615 = vunpack.c.l.b16 %v450
    %v616 = vunpack.c.h.b16 %v450
    %v617 = vunpack.c.l.b16 %v451
    %v618 = vunpack.c.h.b16 %v451
    %v619 = vunpack.c.l.b16 %v452
    %v620 = vunpack.c.h.b16 %v452
    %v621 = vunpack.c.l.b16 %v453
    %v622 = vunpack.c.h.b16 %v453
    %v623 = vunpack.c.l.b16 %v454
    %v624 = vunpack.c.h.b16 %v454
    %v625 = vunpack.c.l.b16 %v455
    %v626 = vunpack.c.h.b16 %v455
    %v627 = vunpack.c.l.b16 %v456
    %v628 = vunpack.c.h.b16 %v456
    %v629 = vunpack.c.l.b16 %v457
    %v630 = vunpack.c.h.b16 %v457
    %v631 = vunpack.c.l.b16 %v458
    %v632 = vunpack.c.h.b16 %v458
    %v633 = vunpack.c.l.b16 %v459
    %v634 = vunpack.c.h.b16 %v459
    %v635 = vunpack.c.l.b16 %v460
    %v636 = vunpack.c.h.b16 %v460
    %v637 = vunpack.c.l.b16 %v461
    %v638 = vunpack.c.h.b16 %v461
    %v639 = vunpack.c.l.b16 %v462
    %v640 = vunpack.c.h.b16 %v462
    %v641 = vunpack.c.l.b16 %v463
    %v642 = vunpack.c.h.b16 %v463
    %v643 = vunpack.c.l.b16 %v464
    %v644 = vunpack.c.h.b16 %v464
    %v645 = vunpack.c.l.b16 %v465
    %v646 = vunpack.c.h.b16 %v465
    %v647 = vunpack.c.l.b16 %v466
    %v648 = vunpack.c.h.b16 %v466
    %v649 = vunpack.c.l.b16 %v467
    %v650 = vunpack.c.h.b16 %v467
    %v651 = vunpack.c.l.b16 %v468
    %v652 = vunpack.c.h.b16 %v468
    %v653 = vunpack.c.l.b16 %v469
    %v654 = vunpack.c.h.b16 %v469
    %v655 = vunpack.c.l.b16 %v470
    %v656 = vunpack.c.h.b16 %v470
    %v657 = vunpack.c.l.b16 %v471
    %v658 = vunpack.c.h.b16 %v471
    %v659 = vunpack.c.l.b16 %v472
    %v660 = vunpack.c.h.b16 %v472
    %v661 = vunpack.c.l.b16 %v473
    %v662 = vunpack.c.h.b16 %v473
    %v663 = vunpack.c.l.b16 %v474
    %v664 = vunpack.c.h.b16 %v474
    %v665 = vunpack.c.l.b16 %v475
    %v666 = vunpack.c.h.b16 %v475
    %v667 = vunpack.c.l.b16 %v476
    %v668 = vunpack.c.h.b16 %v476
    %v669 = vunpack.c.l.b16 %v477
    %v670 = vunpack.c.h.b16 %v477
    %v671 = vunpack.c.l.b16 %v478
    %v672 = vunpack.c.h.b16 %v478
    %v673 = vunpack.c.l.b16 %v479
    %v674 = vunpack.c.h.b16 %v479
    %v675 = vunpack.c.l.b16 %v480
    %v676 = vunpack.c.h.b16 %v480
    %v677 = vunpack.c.l.b16 %v481
    %v678 = vunpack.c.h.b16 %v481
    %v679 = vunpack.c.l.b16 %v482
    %v680 = vunpack.c.h.b16 %v482
    %v681 = vunpack.c.l.b16 %v483
    %v682 = vunpack.c.h.b16 %v483
    %v683 = vunpack.c.l.b16 %v484
    %v684 = vunpack.c.h.b16 %v484
    %v685 = vunpack.c.l.b16 %v485
    %v686 = vunpack.c.h.b16 %v485
    %v687 = vunpack.c.l.b16 %v486
    %v688 = vunpack.c.h.b16 %v486
    %v689 = vunpack.c.l.b16 %v487
    %v690 = vunpack.c.h.b16 %v487
    %v691 = vunpack.c.l.b16 %v488
    %v692 = vunpack.c.h.b16 %v488
    %v693 = vpack.c.b16 %v567, %v565
    %v694 = vpack.c.b16 %v568, %v566
    %v695 = vpack.c.b16 %v571, %v569
    %v696 = vpack.c.b16 %v572, %v570
    %v697 = vpack.c.b16 %v575, %v573
    %v698 = vpack.c.b16 %v576, %v574
    %v699 = vpack.c.b16 %v579, %v577
    %v700 = vpack.c.b16 %v580, %v578
    %v701 = vpack.c.b16 %v583, %v581
    %v702 = vpack.c.b16 %v584, %v582
    %v703 = vpack.c.b16 %v587, %v585
    %v704 = vpack.c.b16 %v588, %v586
    %v705 = vpack.c.b16 %v591, %v589
    %v706 = vpack.c.b16 %v592, %v590
    %v707 = vpack.c.b16 %v595, %v593
    %v708 = vpack.c.b16 %v596, %v594
    %v709 = vpack.c.b16 %v599, %v597
    %v710 = vpack.c.b16 %v600, %v598
    %v711 = vpack.c.b16 %v603, %v601
    %v712 = vpack.c.b16 %v604, %v602
    %v713 = vpack.c.b16 %v607, %v605
    %v714 = vpack.c.b16 %v608, %v606
    %v715 = vpack.c.b16 %v611, %v609
    %v716 = vpack.c.b16 %v612, %v610
    %v717 = vpack.c.b16 %v615, %v613
    %v718 = vpack.c.b16 %v616, %v614
    %v719 = vpack.c.b16 %v619, %v617
    %v720 = vpack.c.b16 %v620, %v618
    %v721 = vpack.c.b16 %v623, %v621
    %v722 = vpack.c.b16 %v624, %v622
    %v723 = vpack.c.b16 %v627, %v625
    %v724 = vpack.c.b16 %v628, %v626
    %v725 = vpack.c.b16 %v631, %v629
    %v726 = vpack.c.b16 %v632, %v630
    %v727 = vpack.c.b16 %v635, %v633
    %v728 = vpack.c.b16 %v636, %v634
    %v729 = vpack.c.b16 %v639, %v637
    %v730 = vpack.c.b16 %v640, %v638
    %v731 = vpack.c.b16 %v643, %v641
    %v732 = vpack.c.b16 %v644, %v642
    %v733 = vpack.c.b16 %v647, %v645
    %v734 = vpack.c.b16 %v648, %v646
    %v735 = vpack.c.b16 %v651, %v649
    %v736 = vpack.c.b16 %v652, %v650
    %v737 = vpack.c.b16 %v655, %v653
    %v738 = vpack.c.b16 %v656, %v654
    %v739 = vpack.c.b16 %v659, %v657
    %v740 = vpack.c.b16 %v660, %v658
    %v741 = vpack.c.b16 %v663, %v661
    %v742 = vpack.c.b16 %v664, %v662
    %v743 = vpack.c.b16 %v667, %v665
    %v744 = vpack.c.b16 %v668, %v666
    %v745 = vpack.c.b16 %v671, %v669
    %v746 = vpack.c.b16 %v672, %v670
    %v747 = vpack.c.b16 %v675, %v673
    %v748 = vpack.c.b16 %v676, %v674
    %v749 = vpack.c.b16 %v679, %v677
    %v750 = vpack.c.b16 %v680, %v678
    %v751 = vpack.c.b16 %v683, %v681
    %v752 = vpack.c.b16 %v684, %v682
    %v753 = vpack.c.b16 %v687, %v685
    %v754 = vpack.c.b16 %v688, %v686
    %v755 = vpack.c.b16 %v691, %v689
    %v756 = vpack.c.b16 %v692, %v690
    %821 = vmatprep.subr.bf16.mxu0 %v694
    %822 = vmatpush1.bf16.msra.mxu0 %v693
    %823 = vmatprep.subr.bf16.mxu0 %v696
    %824 = vmatpush1.bf16.msra.mxu0 %v695
    %825 = vmatprep.subr.bf16.mxu0 %v698
    %826 = vmatpush1.bf16.msra.mxu0 %v697
    %827 = vmatprep.subr.bf16.mxu0 %v700
    %828 = vmatpush1.bf16.msra.mxu0 %v699
    %829 = vmatprep.subr.bf16.mxu0 %v702
    %830 = vmatpush1.bf16.msra.mxu0 %v701
    %831 = vmatprep.subr.bf16.mxu0 %v704
    %832 = vmatpush1.bf16.msra.mxu0 %v703
    %833 = vmatprep.subr.bf16.mxu0 %v706
    %834 = vmatpush1.bf16.msra.mxu0 %v705
    %835 = vmatprep.subr.bf16.mxu0 %v708
    %836 = vmatpush1.bf16.msra.mxu0 %v707
    %837 = vmatprep.subr.bf16.mxu0 %v710
    %838 = vmatpush1.bf16.msra.mxu0 %v709
    %839 = vmatprep.subr.bf16.mxu0 %v712
    %840 = vmatpush1.bf16.msra.mxu0 %v711
    %841 = vmatprep.subr.bf16.mxu0 %v714
    %842 = vmatpush1.bf16.msra.mxu0 %v713
    %843 = vmatprep.subr.bf16.mxu0 %v716
    %844 = vmatpush1.bf16.msra.mxu0 %v715
    %845 = vmatprep.subr.bf16.mxu0 %v718
    %846 = vmatpush1.bf16.msra.mxu0 %v717
    %847 = vmatprep.subr.bf16.mxu0 %v720
    %848 = vmatpush1.bf16.msra.mxu0 %v719
    %849 = vmatprep.subr.bf16.mxu0 %v722
    %850 = vmatpush1.bf16.msra.mxu0 %v721
    %851 = vmatprep.subr.bf16.mxu0 %v724
    %852 = vmatpush1.bf16.msra.mxu0 %v723
    %853 = vmatprep.mubr.bf16.mxu0 %v422
    %854 = vmatmul.mubr.bf16.gmra.mrb[0].mxu0 %v421
    %v855 = vpop.f32.mrb[0].mxu0
    %v856 = vadd.f32 %v494, %v855
    %v857 = vpop.f32.mrb[0].mxu0
    %v858 = vadd.f32 %v498, %v857
    %v859 = vpop.f32.mrb[0].mxu0
    %v860 = vpop.f32.mrb[0].mxu0
    %861 = vdwg.mxu0
    %862 = vmatprep.subr.bf16.mxu0 %v726
    %863 = vmatpush1.bf16.msra.mxu0 %v725
    %864 = vmatprep.subr.bf16.mxu0 %v728
    %865 = vmatpush1.bf16.msra.mxu0 %v727
    %866 = vmatprep.subr.bf16.mxu0 %v730
    %867 = vmatpush1.bf16.msra.mxu0 %v729
    %868 = vmatprep.subr.bf16.mxu0 %v732
    %869 = vmatpush1.bf16.msra.mxu0 %v731
    %870 = vmatprep.subr.bf16.mxu0 %v734
    %871 = vmatpush1.bf16.msra.mxu0 %v733
    %872 = vmatprep.subr.bf16.mxu0 %v736
    %873 = vmatpush1.bf16.msra.mxu0 %v735
    %874 = vmatprep.subr.bf16.mxu0 %v738
    %875 = vmatpush1.bf16.msra.mxu0 %v737
    %876 = vmatprep.subr.bf16.mxu0 %v740
    %877 = vmatpush1.bf16.msra.mxu0 %v739
    %878 = vmatprep.subr.bf16.mxu0 %v742
    %879 = vmatpush1.bf16.msra.mxu0 %v741
    %880 = vmatprep.subr.bf16.mxu0 %v744
    %881 = vmatpush1.bf16.msra.mxu0 %v743
    %882 = vmatprep.subr.bf16.mxu0 %v746
    %883 = vmatpush1.bf16.msra.mxu0 %v745
    %884 = vmatprep.subr.bf16.mxu0 %v748
    %885 = vmatpush1.bf16.msra.mxu0 %v747
    %886 = vmatprep.subr.bf16.mxu0 %v750
    %887 = vmatpush1.bf16.msra.mxu0 %v749
    %888 = vmatprep.subr.bf16.mxu0 %v752
    %889 = vmatpush1.bf16.msra.mxu0 %v751
    %890 = vmatprep.subr.bf16.mxu0 %v754
    %891 = vmatpush1.bf16.msra.mxu0 %v753
    %892 = vmatprep.subr.bf16.mxu0 %v756
    %893 = vmatpush1.bf16.msra.mxu0 %v755
    %894 = vmatprep.mubr.bf16.mxu0 %v424
    %895 = vmatmul.mubr.bf16.gmra.mrb[0].mxu0 %v423
    %v896 = vpop.f32.mrb[0].mxu0
    %v897 = vadd.f32 %v856, %v896
    %v898 = vpop.f32.mrb[0].mxu0
    %v899 = vadd.f32 %v858, %v898
    %v900 = vpop.f32.mrb[0].mxu0
    %v901 = vpop.f32.mrb[0].mxu0
    %902 = vdwg.mxu0
    %v903 = vmax.f32 %v897, 0.0
    %v904 = vmax.f32 %v899, 0.0
    %v905 = vpack.c.bf16 %v903, %v903
    %v906 = vpack.c.bf16 %v904, %v904
    %v907 = vld [vmem:[#allocation8] sm:$0xf]
    %v908 = vld [vmem:[#allocation8 + $0x4] sm:$0xf]
    %v909 = vld [vmem:[#allocation8 + $0x8] sm:$0xf]
    %v910 = vld [vmem:[#allocation8 + $0xc] sm:$0xf]
    %v911 = vld [vmem:[#allocation8 + $0x10] sm:$0xf]
    %v912 = vld [vmem:[#allocation8 + $0x14] sm:$0xf]
    %v913 = vld [vmem:[#allocation8 + $0x18] sm:$0xf]
    %v914 = vld [vmem:[#allocation8 + $0x1c] sm:$0xf]
    %v915 = vld [vmem:[#allocation8 + $0x20] sm:$0xf]
    %v916 = vld [vmem:[#allocation8 + $0x24] sm:$0xf]
    %v917 = vld [vmem:[#allocation8 + $0x28] sm:$0xf]
    %v918 = vld [vmem:[#allocation8 + $0x2c] sm:$0xf]
    %v919 = vld [vmem:[#allocation8 + $0x30] sm:$0xf]
    %v920 = vld [vmem:[#allocation8 + $0x34] sm:$0xf]
    %v921 = vld [vmem:[#allocation8 + $0x38] sm:$0xf]
    %v922 = vld [vmem:[#allocation8 + $0x3c] sm:$0xf]
    %v923 = vld [vmem:[#allocation8 + $0x40] sm:$0xf]
    %v924 = vld [vmem:[#allocation8 + $0x44] sm:$0xf]
    %v925 = vld [vmem:[#allocation8 + $0x48] sm:$0xf]
    %v926 = vld [vmem:[#allocation8 + $0x4c] sm:$0xf]
    %v927 = vld [vmem:[#allocation8 + $0x50] sm:$0xf]
    %v928 = vld [vmem:[#allocation8 + $0x54] sm:$0xf]
    %v929 = vld [vmem:[#allocation8 + $0x58] sm:$0xf]
    %v930 = vld [vmem:[#allocation8 + $0x5c] sm:$0xf]
    %v931 = vld [vmem:[#allocation8 + $0x60] sm:$0xf]
    %v932 = vld [vmem:[#allocation8 + $0x64] sm:$0xf]
    %v933 = vld [vmem:[#allocation8 + $0x68] sm:$0xf]
    %v934 = vld [vmem:[#allocation8 + $0x6c] sm:$0xf]
    %v935 = vld [vmem:[#allocation8 + $0x70] sm:$0xf]
    %v936 = vld [vmem:[#allocation8 + $0x74] sm:$0xf]
    %v937 = vld [vmem:[#allocation8 + $0x78] sm:$0xf]
    %v938 = vld [vmem:[#allocation8 + $0x7c] sm:$0xf]
    %v939 = vld [vmem:[%s6] sm:$0x1]
    %v941 = vlaneseq
    %v942 = vshrl.u32 %v941, 7
    %v943 = vsub.s32 0, %v942
    %v944 = vrot.slane %v939, %v943
    %v978 = vunpack.c.l.b16 %v907
    %v979 = vunpack.c.l.b16 %v908
    %v980 = vunpack.c.l.b16 %v909
    %v981 = vunpack.c.l.b16 %v910
    %v982 = vunpack.c.l.b16 %v911
    %v983 = vunpack.c.l.b16 %v912
    %v984 = vunpack.c.l.b16 %v913
    %v985 = vunpack.c.l.b16 %v914
    %v986 = vunpack.c.l.b16 %v915
    %v987 = vunpack.c.l.b16 %v916
    %v988 = vunpack.c.l.b16 %v917
    %v989 = vunpack.c.l.b16 %v918
    %v990 = vunpack.c.l.b16 %v919
    %v991 = vunpack.c.l.b16 %v920
    %v992 = vunpack.c.l.b16 %v921
    %v993 = vunpack.c.l.b16 %v922
    %v994 = vunpack.c.l.b16 %v923
    %v995 = vunpack.c.l.b16 %v924
    %v996 = vunpack.c.l.b16 %v925
    %v997 = vunpack.c.l.b16 %v926
    %v998 = vunpack.c.l.b16 %v927
    %v999 = vunpack.c.l.b16 %v928
    %v1000 = vunpack.c.l.b16 %v929
    %v1001 = vunpack.c.l.b16 %v930
    %v1002 = vunpack.c.l.b16 %v931
    %v1003 = vunpack.c.l.b16 %v932
    %v1004 = vunpack.c.l.b16 %v933
    %v1005 = vunpack.c.l.b16 %v934
    %v1006 = vunpack.c.l.b16 %v935
    %v1007 = vunpack.c.l.b16 %v936
    %v1008 = vunpack.c.l.b16 %v937
    %v1009 = vunpack.c.l.b16 %v938
    %v1010 = vpack.c.b16 %v979, %v978
    %v1011 = vpack.c.b16 %v981, %v980
    %v1012 = vpack.c.b16 %v983, %v982
    %v1013 = vpack.c.b16 %v985, %v984
    %v1014 = vpack.c.b16 %v987, %v986
    %v1015 = vpack.c.b16 %v989, %v988
    %v1016 = vpack.c.b16 %v991, %v990
    %v1017 = vpack.c.b16 %v993, %v992
    %v1018 = vpack.c.b16 %v995, %v994
    %v1019 = vpack.c.b16 %v997, %v996
    %v1020 = vpack.c.b16 %v999, %v998
    %v1021 = vpack.c.b16 %v1001, %v1000
    %v1022 = vpack.c.b16 %v1003, %v1002
    %v1023 = vpack.c.b16 %v1005, %v1004
    %v1024 = vpack.c.b16 %v1007, %v1006
    %v1025 = vpack.c.b16 %v1009, %v1008
    %1042 = vmatprep.subr.bf16.mxu0 0
    %1043 = vmatpush1.bf16.msra.mxu0 %v1010
    %1044 = vmatprep.subr.bf16.mxu0 0
    %1045 = vmatpush1.bf16.msra.mxu0 %v1011
    %1046 = vmatprep.subr.bf16.mxu0 0
    %1047 = vmatpush1.bf16.msra.mxu0 %v1012
    %1048 = vmatprep.subr.bf16.mxu0 0
    %1049 = vmatpush1.bf16.msra.mxu0 %v1013
    %1050 = vmatprep.subr.bf16.mxu0 0
    %1051 = vmatpush1.bf16.msra.mxu0 %v1014
    %1052 = vmatprep.subr.bf16.mxu0 0
    %1053 = vmatpush1.bf16.msra.mxu0 %v1015
    %1054 = vmatprep.subr.bf16.mxu0 0
    %1055 = vmatpush1.bf16.msra.mxu0 %v1016
    %1056 = vmatprep.subr.bf16.mxu0 0
    %1057 = vmatpush1.bf16.msra.mxu0 %v1017
    %1058 = vmatprep.subr.bf16.mxu0 0
    %1059 = vmatpush1.bf16.msra.mxu0 %v1018
    %1060 = vmatprep.subr.bf16.mxu0 0
    %1061 = vmatpush1.bf16.msra.mxu0 %v1019
    %1062 = vmatprep.subr.bf16.mxu0 0
    %1063 = vmatpush1.bf16.msra.mxu0 %v1020
    %1064 = vmatprep.subr.bf16.mxu0 0
    %1065 = vmatpush1.bf16.msra.mxu0 %v1021
    %1066 = vmatprep.subr.bf16.mxu0 0
    %1067 = vmatpush1.bf16.msra.mxu0 %v1022
    %1068 = vmatprep.subr.bf16.mxu0 0
    %1069 = vmatpush1.bf16.msra.mxu0 %v1023
    %1070 = vmatprep.subr.bf16.mxu0 0
    %1071 = vmatpush1.bf16.msra.mxu0 %v1024
    %1072 = vmatprep.subr.bf16.mxu0 0
    %1073 = vmatpush1.bf16.msra.mxu0 %v1025
    %1074 = vmatprep.mubr.bf16.mxu0 %v906
    %1075 = vmatmul.mubr.bf16.gmra.mrb[0].mxu0 %v905
    %v1076 = vpop.f32.mrb[0].mxu0
    %v1077 = vadd.f32 %v944, %v1076
    %v1078 = vpop.f32.mrb[0].mxu0
    %v1079 = vpop.f32.mrb[0].mxu0
    %v1080 = vpop.f32.mrb[0].mxu0
    %1081 = vdwg.mxu0
    %v1082 = vmax.f32 %v1077, 0.0
    %v1083 = vpack.c.bf16 %v1082, %v1082
    %v1084 = vld [vmem:[#allocation10] sm:$0xf]
    %v1085 = vld [vmem:[#allocation10 + $0x4] sm:$0xf]
    %v1086 = vld [vmem:[#allocation10 + $0x8] sm:$0xf]
    %v1087 = vld [vmem:[#allocation10 + $0xc] sm:$0xf]
    %v1088 = vld [vmem:[#allocation10 + $0x10] sm:$0xf]
    %v1089 = vld [vmem:[#allocation10 + $0x14] sm:$0xf]
    %v1090 = vld [vmem:[#allocation10 + $0x18] sm:$0xf]
    %v1091 = vld [vmem:[#allocation10 + $0x1c] sm:$0xf]
    %v1092 = vld [vmem:[#allocation10 + $0x20] sm:$0xf]
    %v1093 = vld [vmem:[#allocation10 + $0x24] sm:$0xf]
    %v1094 = vld [vmem:[#allocation10 + $0x28] sm:$0xf]
    %v1095 = vld [vmem:[#allocation10 + $0x2c] sm:$0xf]
    %v1096 = vld [vmem:[#allocation10 + $0x30] sm:$0xf]
    %v1097 = vld [vmem:[#allocation10 + $0x34] sm:$0xf]
    %v1098 = vld [vmem:[#allocation10 + $0x38] sm:$0xf]
    %v1099 = vld [vmem:[#allocation10 + $0x3c] sm:$0xf]
    %v1100 = vld [vmem:[%s8] sm:$0x1]
    %v1102 = vlaneseq
    %v1103 = vshrl.u32 %v1102, 7
    %v1104 = vsub.s32 0, %v1103
    %v1105 = vrot.slane %v1100, %v1104
    %v1123 = vunpack.c.l.b16 %v1084
    %v1124 = vunpack.c.l.b16 %v1085
    %v1125 = vunpack.c.l.b16 %v1086
    %v1126 = vunpack.c.l.b16 %v1087
    %v1127 = vunpack.c.l.b16 %v1088
    %v1128 = vunpack.c.l.b16 %v1089
    %v1129 = vunpack.c.l.b16 %v1090
    %v1130 = vunpack.c.l.b16 %v1091
    %v1131 = vunpack.c.l.b16 %v1092
    %v1132 = vunpack.c.l.b16 %v1093
    %v1133 = vunpack.c.l.b16 %v1094
    %v1134 = vunpack.c.l.b16 %v1095
    %v1135 = vunpack.c.l.b16 %v1096
    %v1136 = vunpack.c.l.b16 %v1097
    %v1137 = vunpack.c.l.b16 %v1098
    %v1138 = vunpack.c.l.b16 %v1099
    %v1139 = vpack.c.b16 %v1124, %v1123
    %v1140 = vpack.c.b16 %v1126, %v1125
    %v1141 = vpack.c.b16 %v1128, %v1127
    %v1142 = vpack.c.b16 %v1130, %v1129
    %v1143 = vpack.c.b16 %v1132, %v1131
    %v1144 = vpack.c.b16 %v1134, %v1133
    %v1145 = vpack.c.b16 %v1136, %v1135
    %v1146 = vpack.c.b16 %v1138, %v1137
    %1155 = vmatprep.subr.bf16.mxu0 0
    %1156 = vmatpush1.bf16.msra.mxu0 %v1139
    %1157 = vmatprep.subr.bf16.mxu0 0
    %1158 = vmatpush1.bf16.msra.mxu0 %v1140
    %1159 = vmatprep.subr.bf16.mxu0 0
    %1160 = vmatpush1.bf16.msra.mxu0 %v1141
    %1161 = vmatprep.subr.bf16.mxu0 0
    %1162 = vmatpush1.bf16.msra.mxu0 %v1142
    %1163 = vmatprep.subr.bf16.mxu0 0
    %1164 = vmatpush1.bf16.msra.mxu0 %v1143
    %1165 = vmatprep.subr.bf16.mxu0 0
    %1166 = vmatpush1.bf16.msra.mxu0 %v1144
    %1167 = vmatprep.subr.bf16.mxu0 0
    %1168 = vmatpush1.bf16.msra.mxu0 %v1145
    %1169 = vmatprep.subr.bf16.mxu0 0
    %1170 = vmatpush1.bf16.msra.mxu0 %v1146
    %1171 = vmatprep.subr.bf16.mxu0 0
    %1172 = vmatpush1.bf16.msra.mxu0 0
    %1173 = vmatprep.subr.bf16.mxu0 0
    %1174 = vmatpush1.bf16.msra.mxu0 0
    %1175 = vmatprep.subr.bf16.mxu0 0
    %1176 = vmatpush1.bf16.msra.mxu0 0
    %1177 = vmatprep.subr.bf16.mxu0 0
    %1178 = vmatpush1.bf16.msra.mxu0 0
    %1179 = vmatprep.subr.bf16.mxu0 0
    %1180 = vmatpush1.bf16.msra.mxu0 0
    %1181 = vmatprep.subr.bf16.mxu0 0
    %1182 = vmatpush1.bf16.msra.mxu0 0
    %1183 = vmatprep.subr.bf16.mxu0 0
    %1184 = vmatpush1.bf16.msra.mxu0 0
    %1185 = vmatprep.subr.bf16.mxu0 0
    %1186 = vmatpush1.bf16.msra.mxu0 0
    %1187 = vmatprep.mubr.bf16.mxu0 0
    %1188 = vmatmul.mubr.bf16.gmra.mrb[0].mxu0 %v1083
    %v1189 = vpop.f32.mrb[0].mxu0
    %v1190 = vadd.f32 %v1105, %v1189
    %v1191 = vpop.f32.mrb[0].mxu0
    %v1192 = vpop.f32.mrb[0].mxu0
    %v1193 = vpop.f32.mrb[0].mxu0
    %1194 = vdwg.mxu0
    %v1195 = vmax.f32 %v1190, 0.0
    %v1196 = vpack.c.bf16 %v1195, %v1195
    %v1197 = vld [vmem:[#allocation11] sm:$0xf]
    %v1198 = vld [vmem:[#allocation11 + $0x4] sm:$0xf]
    %v1199 = vld [vmem:[#allocation11 + $0x8] sm:$0xf]
    %v1200 = vld [vmem:[#allocation11 + $0xc] sm:$0xf]
    %v1201 = vld [vmem:[#allocation11 + $0x10] sm:$0xf]
    %v1202 = vld [vmem:[#allocation11 + $0x14] sm:$0xf]
    %v1203 = vld [vmem:[#allocation11 + $0x18] sm:$0xf]
    %v1204 = vld [vmem:[#allocation11 + $0x1c] sm:$0xf]
    %v1205 = vld [vmem:[#allocation11 + $0x20] sm:$0xf]
    %v1206 = vld [vmem:[#allocation11 + $0x24] sm:$0xf]
    %v1207 = vld [vmem:[#allocation11 + $0x28] sm:$0xf]
    %v1208 = vld [vmem:[#allocation11 + $0x2c] sm:$0xf]
    %v1209 = vld [vmem:[#allocation11 + $0x30] sm:$0xf]
    %v1210 = vld [vmem:[#allocation11 + $0x34] sm:$0xf]
    %v1211 = vld [vmem:[#allocation11 + $0x38] sm:$0xf]
    %v1212 = vld [vmem:[#allocation11 + $0x3c] sm:$0xf]
    %v1213 = vld [vmem:[%s10] sm:$0x1]
    %v1215 = vlaneseq
    %v1216 = vshrl.u32 %v1215, 7
    %v1217 = vsub.s32 0, %v1216
    %v1218 = vrot.slane %v1213, %v1217
    %v1236 = vunpack.c.l.b16 %v1197
    %v1237 = vunpack.c.l.b16 %v1198
    %v1238 = vunpack.c.l.b16 %v1199
    %v1239 = vunpack.c.l.b16 %v1200
    %v1240 = vunpack.c.l.b16 %v1201
    %v1241 = vunpack.c.l.b16 %v1202
    %v1242 = vunpack.c.l.b16 %v1203
    %v1243 = vunpack.c.l.b16 %v1204
    %v1244 = vunpack.c.l.b16 %v1205
    %v1245 = vunpack.c.l.b16 %v1206
    %v1246 = vunpack.c.l.b16 %v1207
    %v1247 = vunpack.c.l.b16 %v1208
    %v1248 = vunpack.c.l.b16 %v1209
    %v1249 = vunpack.c.l.b16 %v1210
    %v1250 = vunpack.c.l.b16 %v1211
    %v1251 = vunpack.c.l.b16 %v1212
    %v1252 = vpack.c.b16 %v1237, %v1236
    %v1253 = vpack.c.b16 %v1239, %v1238
    %v1254 = vpack.c.b16 %v1241, %v1240
    %v1255 = vpack.c.b16 %v1243, %v1242
    %v1256 = vpack.c.b16 %v1245, %v1244
    %v1257 = vpack.c.b16 %v1247, %v1246
    %v1258 = vpack.c.b16 %v1249, %v1248
    %v1259 = vpack.c.b16 %v1251, %v1250
    %1268 = vmatprep.subr.bf16.mxu0 0
    %1269 = vmatpush1.bf16.msra.mxu0 %v1252
    %1270 = vmatprep.subr.bf16.mxu0 0
    %1271 = vmatpush1.bf16.msra.mxu0 %v1253
    %1272 = vmatprep.subr.bf16.mxu0 0
    %1273 = vmatpush1.bf16.msra.mxu0 %v1254
    %1274 = vmatprep.subr.bf16.mxu0 0
    %1275 = vmatpush1.bf16.msra.mxu0 %v1255
    %1276 = vmatprep.subr.bf16.mxu0 0
    %1277 = vmatpush1.bf16.msra.mxu0 %v1256
    %1278 = vmatprep.subr.bf16.mxu0 0
    %1279 = vmatpush1.bf16.msra.mxu0 %v1257
    %1280 = vmatprep.subr.bf16.mxu0 0
    %1281 = vmatpush1.bf16.msra.mxu0 %v1258
    %1282 = vmatprep.subr.bf16.mxu0 0
    %1283 = vmatpush1.bf16.msra.mxu0 %v1259
    %1284 = vmatprep.subr.bf16.mxu0 0
    %1285 = vmatpush1.bf16.msra.mxu0 0
    %1286 = vmatprep.subr.bf16.mxu0 0
    %1287 = vmatpush1.bf16.msra.mxu0 0
    %1288 = vmatprep.subr.bf16.mxu0 0
    %1289 = vmatpush1.bf16.msra.mxu0 0
    %1290 = vmatprep.subr.bf16.mxu0 0
    %1291 = vmatpush1.bf16.msra.mxu0 0
    %1292 = vmatprep.subr.bf16.mxu0 0
    %1293 = vmatpush1.bf16.msra.mxu0 0
    %1294 = vmatprep.subr.bf16.mxu0 0
    %1295 = vmatpush1.bf16.msra.mxu0 0
    %1296 = vmatprep.subr.bf16.mxu0 0
    %1297 = vmatpush1.bf16.msra.mxu0 0
    %1298 = vmatprep.subr.bf16.mxu0 0
    %1299 = vmatpush1.bf16.msra.mxu0 0
    %1300 = vmatprep.mubr.bf16.mxu0 0
    %1301 = vmatmul.mubr.bf16.gmra.mrb[0].mxu0 %v1196
    %v1302 = vpop.f32.mrb[0].mxu0
    %v1303 = vadd.f32 %v1218, %v1302
    %v1304 = vpop.f32.mrb[0].mxu0
    %v1305 = vpop.f32.mrb[0].mxu0
    %v1306 = vpop.f32.mrb[0].mxu0
    %1307 = vdwg.mxu0
    %1308 = vst [vmem:[#allocation13] sm:$0xff] %v1303
    // Predicated region
    $region70: #{tpu_custom_call.1} parent=1 // pred_check
      _
    $region71: #{tpu_custom_call.1} parent=1 // pred_check_branch
      %1310 = sbr.rel (0) target = $region73
    $region72: #{tpu_custom_call.1} parent=1 // pred_region
      %s1312 = ssub.s32 128, 128
      %1313 = vsyncadd [#allocation4], %s1312
      %s1315 = sshll.u32 [#allocation13], 4
      %s1316 = int_to_ptr.vmem [resolvable:$true] %s1315
      %1318 = dma.vmem_to_hbm [thread:$0]  %s1316, 128, %s11, [#allocation4]
    $region73: #{tpu_custom_call.1} parent=1 // pred_fallthru
      _
    // Predicated region
    $region74: #{tpu_custom_call.1} parent=1 // pred_check
      _
    $region75: #{tpu_custom_call.1} parent=1 // pred_check_branch
      %1320 = sbr.rel (0) target = $region77
    $region76: #{tpu_custom_call.1} parent=1 // pred_region
      %1321 = dma.done [#allocation4], 128
    $region77: #{tpu_custom_call.1} parent=1 // pred_fallthru
      _
    %1322 = vsyncpa [#allocation3], 1
    %1323 = vsyncpa [#allocation6], 1
    %1324 = vsyncpa [#allocation9], 1
    %1325 = vsyncpa [#allocation12], 1
    %1326 = vsyncpa [#allocation4], 1

</llo_original>
